<compile_context>
chip_gen: v5e
topology: v5e:2x2
jax: 0.10.0
libtpu: 0.0.40
codegen_flags: <defaults>
</compile_context>

<pallas_src>
import functools

import jax
import jax.numpy as jnp
from jax.experimental import pallas as pl
from jax.experimental.pallas import tpu as pltpu


def _vmem_budget():
    """(block_bytes_target, vmem_limit_cap) sized per TPU generation."""
    try:
        cap = int(pltpu.get_tpu_info().vmem_capacity_bytes)
    except Exception:
        cap = 64 << 20                      # conservative default (v7x per-TC)
    if cap >= (96 << 20):                   # v5e / v6e: 128 MiB physical VMEM
        return 12 << 20, 100 << 20
    # v7x: 64 MiB per TensorCore -> leave headroom for compiler-internal scratch
    return 4 << 20, 52 << 20


# ----------------------------------------------------------------------------
# Kernel variant 1: whole channel axis in one tile (common case, no halo DMA).
# ----------------------------------------------------------------------------
def _eca_kernel_nohalo(w_ref, x_ref, o_ref, *, k_size):
    """w_ref: SMEM (k,) f32 taps; x_ref/o_ref: VMEM (bt, C, HW) blocks."""
    pad = (k_size - 1) // 2
    bt, c_tile, hw = x_ref.shape

    inv_hw = jnp.float32(1.0 / hw)
    # Global average pool over the spatial (lane) axis; channels stay on sublanes.
    pooled = jnp.sum(x_ref[...], axis=-1, keepdims=True,
                     dtype=jnp.float32) * inv_hw                    # (bt, C, 1)

    # Conv1d zero padding over the channel axis.
    zpad = jnp.zeros((bt, pad, 1), jnp.float32)
    pooled_ext = jnp.concatenate([zpad, pooled, zpad], axis=1)      # (bt, C+2p, 1)

    acc = w_ref[0] * pooled_ext[:, 0:c_tile, :]
    for j in range(1, k_size):
        acc = acc + w_ref[j] * pooled_ext[:, j:j + c_tile, :]

    gate = jax.nn.sigmoid(acc).astype(x_ref.dtype)                  # (bt, C, 1)
    o_ref[...] = x_ref[...] * gate                                  # lane broadcast


# ----------------------------------------------------------------------------
# Kernel variant 2: channel axis tiled -> fetch +-pad neighbour channels by DMA.
# ----------------------------------------------------------------------------
def _eca_kernel_halo(w_ref, x_ref, x_hbm, o_ref, lhalo, rhalo, sem, *, k_size):
    """
    w_ref : SMEM (k,) f32        conv1d taps
    x_ref : VMEM (bt, ct, HW)    input block (auto-pipelined)
    x_hbm : ANY  (B, C, HW)      raw view of x for the channel-halo DMA
    o_ref : VMEM (bt, ct, HW)    output block
    lhalo : VMEM (bt, pad, HW)   left-neighbour channel scratch
    rhalo : VMEM (bt, pad, HW)   right-neighbour channel scratch
    sem   : DMA semaphores (2,)
    """
    pad = (k_size - 1) // 2
    bt, c_tile, hw = x_ref.shape

    bi = pl.program_id(0)
    ct = pl.program_id(1)
    n_ct = pl.num_programs(1)
    b0 = bi * bt
    c0 = ct * c_tile

    has_left = ct > 0
    has_right = ct < n_ct - 1

    # Read the SMEM taps before any DMA wait (wait breaks sst->sld forwarding).
    taps = [w_ref[j] for j in range(k_size)]

    # Kick off only the halo DMAs that are actually needed; they overlap the
    # spatial reduction below.  Guarded starts are paired with guarded waits.
    @pl.when(has_left)
    def _():
        pltpu.make_async_copy(
            x_hbm.at[pl.ds(b0, bt), pl.ds(c0 - pad, pad), :],
            lhalo, sem.at[0]).start()

    @pl.when(has_right)
    def _():
        pltpu.make_async_copy(
            x_hbm.at[pl.ds(b0, bt), pl.ds(c0 + c_tile, pad), :],
            rhalo, sem.at[1]).start()

    # Global average pool over the spatial (lane) axis (reduce straight from the
    # ref -- do not keep the whole block value live across the DMA waits).
    inv_hw = jnp.float32(1.0 / hw)
    pooled = jnp.sum(x_ref[...], axis=-1, keepdims=True,
                     dtype=jnp.float32) * inv_hw                    # (bt, ct, 1)

    @pl.when(has_left)
    def _():
        pltpu.make_async_copy(
            x_hbm.at[pl.ds(b0, bt), pl.ds(c0 - pad, pad), :],
            lhalo, sem.at[0]).wait()

    @pl.when(has_right)
    def _():
        pltpu.make_async_copy(
            x_hbm.at[pl.ds(b0, bt), pl.ds(c0 + c_tile, pad), :],
            rhalo, sem.at[1]).wait()

    # Stale scratch at channel edges is harmless: jnp.where selects exact zeros
    # (matching Conv1d's zero padding over the channel axis).
    lp = jnp.sum(lhalo[...], axis=-1, keepdims=True, dtype=jnp.float32) * inv_hw
    rp = jnp.sum(rhalo[...], axis=-1, keepdims=True, dtype=jnp.float32) * inv_hw
    lp = jnp.where(has_left, lp, 0.0)
    rp = jnp.where(has_right, rp, 0.0)

    # k-tap conv across channels via static sublane slices (f32 accumulation).
    pooled_ext = jnp.concatenate([lp, pooled, rp], axis=1)          # (bt, ct+2p, 1)
    acc = taps[0] * pooled_ext[:, 0:c_tile, :]
    for j in range(1, k_size):
        acc = acc + taps[j] * pooled_ext[:, j:j + c_tile, :]

    gate = jax.nn.sigmoid(acc).astype(x_ref.dtype)                  # (bt, ct, 1)
    o_ref[...] = x_ref[...] * gate                                  # lane broadcast


# ----------------------------------------------------------------------------
# Tiling heuristics + wrapper
# ----------------------------------------------------------------------------
def _choose_tiles(b, c, hw, itemsize, pad, block_target):
    """Pick (b_tile, c_tile) targeting `block_target` bytes per block."""
    # Sublane-packing multiple for this dtype (8 f32, 16 bf16, 32 int8/fp8).
    sub = max(8, 32 // max(itemsize, 1))

    def blk(bt, ct):
        return bt * ct * hw * itemsize

    # Channel tile: largest divisor of C (multiple of `sub`, or C itself, >= pad)
    # whose block fits the per-block target.
    cands = [d for d in range(c, 0, -1)
             if c % d == 0 and (d == c or d % sub == 0) and d >= pad]
    c_tile = cands[-1]                         # smallest legal tile as fallback
    for d in cands:
        if blk(1, d) <= block_target:
            c_tile = d
            break

    # Pack batch elements per step only when the whole channel axis fits in one
    # tile (keeps the no-halo variant usable) and blocks are still small.
    b_tile = 1
    if c_tile == c:
        for d in range(1, b + 1):
            if b % d == 0 and blk(d, c) <= block_target:
                b_tile = d

    # Prefer >= 2 grid steps so multi-TensorCore parts can split the work.
    if (b // b_tile) * (c // c_tile) < 2:
        if b >= 2:
            for d in range(b // 2, 0, -1):     # shrink batch packing (no halo cost)
                if b % d == 0:
                    b_tile = d
                    break
        elif c_tile == c:
            for d in range(c // 2, 0, -1):     # split channels (halo path handles it)
                if c % d == 0 and d % sub == 0 and d >= pad:
                    c_tile = d
                    break
    return b_tile, c_tile


def eca_forward(x, weight, k_size=3, *, c_tile=None, b_tile=None):
    """ECA forward. x: (B, C, H, W); weight: (k,) or (1,1,k) conv taps."""
    assert k_size % 2 == 1 and k_size >= 3, "ECA uses an odd k_size >= 3"
    b, c, h, w = x.shape
    hw = h * w
    pad = (k_size - 1) // 2
    assert c >= pad, "need at least (k-1)//2 channels"

    weight = jnp.asarray(weight, dtype=jnp.float32).reshape(-1)
    assert weight.shape[0] == k_size

    itemsize = jnp.dtype(x.dtype).itemsize
    block_target, vmem_cap = _vmem_budget()
    auto_bt, auto_ct = _choose_tiles(b, c, hw, itemsize, pad, block_target)
    if c_tile is None:
        c_tile = auto_ct
    if b_tile is None:
        b_tile = auto_bt if c_tile == auto_ct else 1
    assert c % c_tile == 0 and (c_tile == c or c_tile % 8 == 0) and c_tile >= pad
    assert b % b_tile == 0

    x2 = x.reshape(b, c, hw)
    grid = (b // b_tile, c // c_tile)
    io_spec_in = pl.BlockSpec((b_tile, c_tile, hw), lambda bi, ci: (bi, ci, 0))
    io_spec_out = pl.BlockSpec((b_tile, c_tile, hw), lambda bi, ci: (bi, ci, 0))
    w_spec = pl.BlockSpec(memory_space=pltpu.MemorySpace.SMEM)

    # Explicit VMEM budget: 2x(in)+2x(out) blocks, halo scratch, plus headroom for
    # streaming f32 temporaries.  Capped per-generation (see _vmem_budget).
    blk_bytes = b_tile * c_tile * hw * itemsize
    halo_bytes = (2 * b_tile * pad * hw * itemsize) if c_tile < c else 0
    need = 4 * blk_bytes + b_tile * c_tile * hw * 4 + halo_bytes + (2 << 20)
    vmem_limit = int(min(max(2 * need, 32 << 20), vmem_cap))

    # TODO(synk): on v7x, CORE_PARALLEL on a grid axis could split the two
    # TensorCores explicitly; plain "parallel" is kept here for portability.
    cparams = pltpu.CompilerParams(
        dimension_semantics=("parallel", "parallel"),
        vmem_limit_bytes=vmem_limit)

    if c_tile == c:
        # No-halo variant: no ANY input, no scratch, no DMAs.
        kernel = functools.partial(_eca_kernel_nohalo, k_size=k_size)
        out = pl.pallas_call(
            kernel,
            out_shape=jax.ShapeDtypeStruct((b, c, hw), x.dtype),
            grid=grid,
            in_specs=[w_spec, io_spec_in],
            out_specs=io_spec_out,
            compiler_params=cparams,
        )(weight, x2)
    else:
        kernel = functools.partial(_eca_kernel_halo, k_size=k_size)
        out = pl.pallas_call(
            kernel,
            out_shape=jax.ShapeDtypeStruct((b, c, hw), x.dtype),
            grid=grid,
            in_specs=[
                w_spec,                                              # taps
                io_spec_in,                                          # x block
                pl.BlockSpec(memory_space=pl.ANY),                   # raw x
            ],
            out_specs=io_spec_out,
            scratch_shapes=[
                pltpu.VMEM((b_tile, pad, hw), x.dtype),   # left halo channels
                pltpu.VMEM((b_tile, pad, hw), x.dtype),   # right halo channels
                pltpu.SemaphoreType.DMA((2,)),
            ],
            compiler_params=cparams,
        )(weight, x2, x2)
    return out.reshape(b, c, h, w)


def _eca_reference(x, weight, k_size=3):
    """Pure-JAX reference matching the PyTorch eca_layer (f32 math)."""
    xf = x.astype(jnp.float32)
    pooled = jnp.mean(xf, axis=(2, 3))                           # (B, C)
    pad = (k_size - 1) // 2
    pooled_p = jnp.pad(pooled, ((0, 0), (pad, pad)))
    c = x.shape[1]
    w = jnp.asarray(weight, dtype=jnp.float32).reshape(-1)
    y = jnp.zeros_like(pooled)
    for j in range(k_size):
        y = y + w[j] * pooled_p[:, j:j + c]
    y = jax.nn.sigmoid(y)
    return xf * y[:, :, None, None]


if __name__ == "__main__":
    key = jax.random.PRNGKey(0)
    k1, k2, k3, k4, k5 = jax.random.split(key, 5)

    # --- Test 1: auto tiling (no-halo kernel variant, >=2 grid steps), k=3 ---
    B, C, H, W = 2, 4, 16, 16
    K = 3
    x = jax.random.normal(k1, (B, C, H, W), dtype=jnp.float32)
    bound = (1.0 / K) ** 0.5
    w3 = jax.random.uniform(k2, (K,), jnp.float32, minval=-bound, maxval=bound)
    out = jax.block_until_ready(eca_forward(x, w3, k_size=K))
    ref = _eca_reference(x, w3, k_size=K)
    assert out.shape == (B, C, H, W)
    assert jnp.allclose(out, ref, atol=1e-5, rtol=1e-5), "test1 mismatch"

    # --- Test 2: forced channel tiling + guarded halo DMA path (grid 2x2), k=5 ---
    B2, C2, H2, W2 = 2, 16, 16, 16
    K2 = 5
    x2 = jax.random.normal(k3, (B2, C2, H2, W2), dtype=jnp.float32)
    bound = (1.0 / K2) ** 0.5
    w5 = jax.random.uniform(k4, (K2,), jnp.float32, minval=-bound, maxval=bound)
    out2 = jax.block_until_ready(eca_forward(x2, w5, k_size=K2, c_tile=8, b_tile=1))
    ref2 = _eca_reference(x2, w5, k_size=K2)
    assert jnp.allclose(out2, ref2, atol=1e-5, rtol=1e-5), "test2 mismatch"

    # --- Test 3: bf16 HBM traffic, halo path, sublane-packed channel tile (16) ---
    B3, C3, H3, W3 = 2, 32, 16, 16
    x3 = jax.random.normal(k5, (B3, C3, H3, W3), dtype=jnp.float32)
    xb = x3.astype(jnp.bfloat16)
    out3 = jax.block_until_ready(eca_forward(xb, w5, k_size=K2, c_tile=16, b_tile=1))
    ref3 = _eca_reference(xb, w5, k_size=K2)
    assert out3.dtype == jnp.bfloat16
    assert jnp.allclose(out3.astype(jnp.float32), ref3, atol=6e-2, rtol=5e-2), \
        "test3 mismatch"

    # --- Test 4: bf16 auto path (no-halo variant with bf16 blocks) ---
    out4 = jax.block_until_ready(eca_forward(xb, w5, k_size=K2))
    assert jnp.allclose(out4.astype(jnp.float32), ref3, atol=6e-2, rtol=5e-2), \
        "test4 mismatch"

    print("KERNEL_OK")
</pallas_src>

<mosaic_0001>
module attributes {stable_mosaic.version = 11 : i64} {
  func.func @_eca_kernel_nohalo(%arg0: i32, %arg1: i32, %arg2: memref<3xf32, #tpu.memory_space<smem>>, %arg3: memref<1x4x256xf32, #tpu.memory_space<vmem>>, %arg4: memref<1x4x256xf32, #tpu.memory_space<vmem>>) attributes {dimension_semantics = [#tpu.dimension_semantics<parallel>, #tpu.dimension_semantics<parallel>], iteration_bounds = array<i64: 2, 1>, scalar_prefetch = 0 : i64, scratch_operands = 0 : i64, tpu.core_type = #tpu.core_type<tc>, window_params = [{transform_indices = @transform_0, window_bounds = array<i64: 3>}, {transform_indices = @transform_1, window_bounds = array<i64: 1, 4, 256>}, {transform_indices = @transform_2, window_bounds = array<i64: 1, 4, 256>}]} {
    %c0 = arith.constant 0 : index
    %c0_0 = arith.constant 0 : index
    %c0_1 = arith.constant 0 : index
    %0 = vector.load %arg3[%c0, %c0_0, %c0_1] : memref<1x4x256xf32, #tpu.memory_space<vmem>>, vector<1x4x256xf32>
    %cst = arith.constant dense<0.000000e+00> : vector<1x4xf32>
    %1 = vector.multi_reduction <add>, %0, %cst [2] : vector<1x4x256xf32> to vector<1x4xf32>
    %2 = vector.shape_cast %1 : vector<1x4xf32> to vector<1x4x1xf32>
    %cst_2 = arith.constant 3.906250e-03 : f32
    %3 = vector.broadcast %cst_2 : f32 to vector<1x4x1xf32>
    %4 = arith.mulf %2, %3 : vector<1x4x1xf32>
    %cst_3 = arith.constant 0.000000e+00 : f32
    %5 = vector.broadcast %cst_3 : f32 to vector<1x1x1xf32>
    %6 = tpu.concatenate %5, %4, %5 in 1 : vector<1x1x1xf32>, vector<1x4x1xf32>, vector<1x1x1xf32> -> vector<1x6x1xf32>
    %c0_4 = arith.constant 0 : index
    %7 = memref.load %arg2[%c0_4] : memref<3xf32, #tpu.memory_space<smem>>
    %8 = vector.extract_strided_slice %6 {offsets = [0, 0, 0], sizes = [1, 4, 1], strides = [1, 1, 1]} : vector<1x6x1xf32> to vector<1x4x1xf32>
    %9 = vector.broadcast %7 : f32 to vector<1x4x1xf32>
    %10 = arith.mulf %9, %8 : vector<1x4x1xf32>
    %c1 = arith.constant 1 : index
    %11 = memref.load %arg2[%c1] : memref<3xf32, #tpu.memory_space<smem>>
    %12 = vector.extract_strided_slice %6 {offsets = [0, 1, 0], sizes = [1, 4, 1], strides = [1, 1, 1]} : vector<1x6x1xf32> to vector<1x4x1xf32>
    %13 = vector.broadcast %11 : f32 to vector<1x4x1xf32>
    %14 = arith.mulf %13, %12 : vector<1x4x1xf32>
    %15 = arith.addf %10, %14 : vector<1x4x1xf32>
    %c2 = arith.constant 2 : index
    %16 = memref.load %arg2[%c2] : memref<3xf32, #tpu.memory_space<smem>>
    %17 = vector.extract_strided_slice %6 {offsets = [0, 2, 0], sizes = [1, 4, 1], strides = [1, 1, 1]} : vector<1x6x1xf32> to vector<1x4x1xf32>
    %18 = vector.broadcast %16 : f32 to vector<1x4x1xf32>
    %19 = arith.mulf %18, %17 : vector<1x4x1xf32>
    %20 = arith.addf %15, %19 : vector<1x4x1xf32>
    %21 = arith.negf %20 : vector<1x4x1xf32>
    %22 = math.exp %21 : vector<1x4x1xf32>
    %cst_5 = arith.constant 1.000000e+00 : f32
    %23 = vector.broadcast %cst_5 : f32 to vector<1x4x1xf32>
    %24 = arith.addf %23, %22 : vector<1x4x1xf32>
    %25 = arith.divf %23, %24 : vector<1x4x1xf32>
    %c0_6 = arith.constant 0 : index
    %c0_7 = arith.constant 0 : index
    %c0_8 = arith.constant 0 : index
    %26 = vector.load %arg3[%c0_6, %c0_7, %c0_8] : memref<1x4x256xf32, #tpu.memory_space<vmem>>, vector<1x4x256xf32>
    %27 = vector.broadcast %25 : vector<1x4x1xf32> to vector<1x4x256xf32>
    %28 = arith.mulf %26, %27 : vector<1x4x256xf32>
    %c0_9 = arith.constant 0 : index
    %c0_10 = arith.constant 0 : index
    %c0_11 = arith.constant 0 : index
    %29 = vector.load %arg4[%c0_9, %c0_10, %c0_11] : memref<1x4x256xf32, #tpu.memory_space<vmem>>, vector<1x4x256xf32>
    tpu.vector_store %arg4[%c0_9, %c0_10, %c0_11], %28 {strides = array<i32>} : memref<1x4x256xf32, #tpu.memory_space<vmem>>, vector<1x4x256xf32>,
    return
  }
  func.func @transform_0(%arg0: i32, %arg1: i32) -> i32 {
    %c0_i32 = arith.constant 0 : i32
    %c0_i32_0 = arith.constant 0 : i32
    return %c0_i32 : i32
  }
  func.func @transform_1(%arg0: i32, %arg1: i32) -> (i32, i32, i32) {
    %c0_i32 = arith.constant 0 : i32
    %c0_i32_0 = arith.constant 0 : i32
    return %arg0, %arg1, %c0_i32 : i32, i32, i32
  }
  func.func @transform_2(%arg0: i32, %arg1: i32) -> (i32, i32, i32) {
    %c0_i32 = arith.constant 0 : i32
    %c0_i32_0 = arith.constant 0 : i32
    return %arg0, %arg1, %c0_i32 : i32, i32, i32
  }
}

</mosaic_0001>

<llo_original>
// kernel: tpu_custom_call.1
$region0: #{tpu_custom_call.1}
  #allocation0 [shape = 'u32[]', space=smem, size = 0x4, offset = 0x4, fixed_abs, tag = 'smem constant byte address 0x4 - core index']
  #allocation1 [shape = 'u32[72,128]{1,0:T(1,128)}', space=vmem, size = 0x9000, scoped, tag = 'internal scratch']
  %s0 = inlined_call_operand.hbm [shape: f32[3], index: 0, kind: input, shape index: {}]
  %s1 = inlined_call_operand.hbm [shape: f32[2,4,256], index: 1, kind: input, shape index: {}]
  %s2 = inlined_call_operand.hbm [shape: f32[2,4,256], index: 2, kind: output, shape index: {}]
  %s3 = sld [smem:[#allocation0]]
  $region49: #{tpu_custom_call.1} parent=0
    _
  %s5 = ssub.s32 1, %s3
  %s6 = scalar_select 0, %s5, %s3
  $region1: #{tpu_custom_call.1} parent=0
    #allocation2 [shape = 'u8[512]{0}', space=smem, size = 0x200, scoped, tag = 'input window, operand 0, single buffered']
    #allocation3 [shape = 's32[2]{0}', space=sflag, size = 0x8, scoped, tag = 'scoped memory for tpu_custom_call.1']
    #allocation4 [shape = 's32[2]{0}', space=sflag, size = 0x8, scoped, tag = 'scoped memory for tpu_custom_call.1']
    #allocation5 [shape = 's32[2]{0}', space=sflag, size = 0x8, scoped, tag = 'scoped memory for tpu_custom_call.1']
    #allocation6 [shape = 'u8[8192]{0}', space=vmem, size = 0x2000, scoped, tag = 'input window, operand 1']
    #allocation7 [shape = 'u8[8192]{0}', space=vmem, size = 0x2000, scoped, tag = 'output window, operand 0']
    %7 = vsyncpa [#allocation5], 0
    %8 = vsyncpa [#allocation3], 0
    %s9 = scalar_lea.sflag [#allocation3], 1
    %10 = vsyncpa %s9, 0
    %11 = vsyncpa [#allocation4], 0
    %s12 = scalar_lea.sflag [#allocation4], 1
    %13 = vsyncpa %s12, 0
    loop: start=0, step=1, limit=4
    $region2: #{tpu_custom_call.1} parent=1 // loop_pre_header
      _
    $region3: #{tpu_custom_call.1} parent=1 // loop_header
      %s15 = sphi 0, %s19
      %p16 = scmp.ge.s32.totalorder %s15, 4
      %s22 = sphi 0, %s34
      %s23 = sphi 0, %s30
      %s24 = sphi 0, %s22
      %s25 = sphi 0, %s23
      %s26 = sphi 0, %s24
      %s27 = sphi 0, %s25
      %s35 = sphi 0, %s35
      %s37 = sphi 0, %s35
      %s38 = sphi 0, %s37
      %s52 = sphi 0, %s38
      %s60 = sphi 0, %s62
      %s63 = sphi 0, %s60
      %s64 = sphi 0, %s63
      %s80 = sphi 0, %s64
      %s88 = sphi 0, %s90
      %s91 = sphi 0, %s88
      %s92 = sphi 0, %s91
      %s108 = sphi 0, %s92
    $region4: #{tpu_custom_call.1} parent=1 // loop_header_branch
      %18 = sbr.rel (%p16) target = $region8
    $region5: #{tpu_custom_call.1} parent=1 // loop_body
      %s20 = ssub.s32 %s15, 1
      %s21 = ssub.s32 %s15, 2
      %s28 = sadd.s32 1, %s23
      %p29 = scmp.ge.s32.totalorder %s28, 1
      %s30 = scalar_select %p29, 0, %s28
      %s31 = sadd.s32 1, %s22
      %s32 = scalar_select %p29, %s31, %s22
      %p33 = scmp.ge.s32.totalorder %s32, 2
      %s34 = scalar_select %p33, 0, %s32
      %s36 = sadd.s32 %s35, 1
      %p39 = scmp.eq.s32.totalorder %s15, 1
      %p40 = scmp.ne.s32.totalorder %s35, %s37
      %p41 = scmp.eq.s32.totalorder %s15, 0
      %p42 = por %p40, %p41
      %p43 = scmp.ne.s32.totalorder %s35, %s37
      %p44 = scmp.eq.s32.totalorder %s20, 1
      %p45 = por %p43, %p44
      %p46 = scmp.ne.s32.totalorder %s37, %s38
      %p47 = scmp.eq.s32.totalorder %s20, 0
      %p48 = por %p46, %p47
      %p49 = scmp.ne.s32.totalorder %s37, %s38
      %p50 = scmp.eq.s32.totalorder %s21, 1
      %p51 = por %p49, %p50
      %p53 = scmp.ne.s32.totalorder %s38, %s52
      %p54 = scmp.eq.s32.totalorder %s21, 0
      %p55 = por %p53, %p54
      %s56 = ssub.s32 %s22, %s34
      %s57 = ssub.s32 %s23, %s30
      %s58 = sor.u32 %s56, %s57
      %p59 = scmp.eq.s32.totalorder %s58, 0
      %s61 = sadd.s32 %s60, 1
      %s62 = scalar_select %p59, %s60, %s61
      %p65 = pneg %p59
      %p66 = scmp.eq.s32.totalorder %s15, 1
      %p67 = por %p65, %p66
      %p68 = scmp.ne.s32.totalorder %s60, %s63
      %p69 = scmp.eq.s32.totalorder %s15, 0
      %p70 = por %p68, %p69
      %p71 = scmp.ne.s32.totalorder %s60, %s63
      %p72 = scmp.eq.s32.totalorder %s20, 1
      %p73 = por %p71, %p72
      %p74 = scmp.ne.s32.totalorder %s63, %s64
      %p75 = scmp.eq.s32.totalorder %s20, 0
      %p76 = por %p74, %p75
      %p77 = scmp.ne.s32.totalorder %s63, %s64
      %p78 = scmp.eq.s32.totalorder %s21, 1
      %p79 = por %p77, %p78
      %p81 = scmp.ne.s32.totalorder %s64, %s80
      %p82 = scmp.eq.s32.totalorder %s21, 0
      %p83 = por %p81, %p82
      %s84 = ssub.s32 %s22, %s34
      %s85 = ssub.s32 %s23, %s30
      %s86 = sor.u32 %s84, %s85
      %p87 = scmp.eq.s32.totalorder %s86, 0
      %s89 = sadd.s32 %s88, 1
      %s90 = scalar_select %p87, %s88, %s89
      %p93 = pneg %p87
      %p94 = scmp.eq.s32.totalorder %s15, 1
      %p95 = por %p93, %p94
      %p96 = scmp.ne.s32.totalorder %s88, %s91
      %p97 = scmp.eq.s32.totalorder %s15, 0
      %p98 = por %p96, %p97
      %p99 = scmp.ne.s32.totalorder %s88, %s91
      %p100 = scmp.eq.s32.totalorder %s20, 1
      %p101 = por %p99, %p100
      %p102 = scmp.ne.s32.totalorder %s91, %s92
      %p103 = scmp.eq.s32.totalorder %s20, 0
      %p104 = por %p102, %p103
      %p105 = scmp.ne.s32.totalorder %s91, %s92
      %p106 = scmp.eq.s32.totalorder %s21, 1
      %p107 = por %p105, %p106
      %p109 = scmp.ne.s32.totalorder %s92, %s108
      %p110 = scmp.eq.s32.totalorder %s21, 0
      %p111 = por %p109, %p110
      %p112 = scmp.le.s32.totalorder 1, %s15
      %p113 = scmp.lt.s32.totalorder %s15, 3
      %p114 = pnand %p112, %p113
      %p115 = pneg %p114
      // Predicated region
      $region9: #{tpu_custom_call.1} parent=5 // pred_check
        _
      $region10: #{tpu_custom_call.1} parent=5 // pred_check_branch
        %117 = sbr.rel (%p114) target = $region12
      $region11: #{tpu_custom_call.1} parent=5 // pred_region
        %s118 = ssub.s32 %s15, 1
        // Predicated region
        $region13: #{tpu_custom_call.1} parent=11 // pred_check
          %p119 = pneg %p48
        $region14: #{tpu_custom_call.1} parent=11 // pred_check_branch
          %121 = sbr.rel (%p119) target = $region16
        $region15: #{tpu_custom_call.1} parent=11 // pred_region
          %123 = vsyncadd [#allocation5], 0
          %s125 = sshll.u32 %s0, 4
          %s126 = int_to_ptr.hbm [resolvable:$true] %s125
          %128 = dma.hbm_to_smem %s126, 16, [#allocation2], [#allocation5]
        $region16: #{tpu_custom_call.1} parent=11 // pred_fallthru
          _
      $region12: #{tpu_custom_call.1} parent=5 // pred_fallthru
        _
      %p129 = scmp.lt.s32.totalorder %s15, 2
      // Predicated region
      $region17: #{tpu_custom_call.1} parent=5 // pred_check
        %p130 = pneg %p129
      $region18: #{tpu_custom_call.1} parent=5 // pred_check_branch
        %132 = sbr.rel (%p130) target = $region20
      $region19: #{tpu_custom_call.1} parent=5 // pred_region
        // Predicated region
        $region21: #{tpu_custom_call.1} parent=19 // pred_check
          %p133 = pneg %p70
        $region22: #{tpu_custom_call.1} parent=19 // pred_check_branch
          %135 = sbr.rel (%p133) target = $region24
        $region23: #{tpu_custom_call.1} parent=19 // pred_region
          %s136 = sand.u32 %s60, 1
          %s137 = scalar_lea.sflag [#allocation3], %s136
          %s138 = sand.u32 %s60, 1
          %s139 = smul.addr %s138, 8
          %s140 = scalar_lea.vmem [#allocation6], %s139
          %142 = vsyncadd %s137, 0
          %s143 = smul.addr %s23, 2
          %s144 = smul.addr %s22, 2
          %s145 = sadd.s32 %s143, %s144
          %s146 = smul.addr %s145, 4
          %s147 = scalar_lea.hbm %s1, %s146
          %s149 = sshll.u32 %s147, 4
          %s150 = int_to_ptr.hbm [resolvable:$true] %s149
          %s151 = sshll.u32 %s140, 4
          %s152 = int_to_ptr.vmem [resolvable:$true] %s151
          %154 = dma.hbm_to_vmem [thread:$0]  %s150, 128, %s152, %s137
        $region24: #{tpu_custom_call.1} parent=19 // pred_fallthru
          _
      $region20: #{tpu_custom_call.1} parent=5 // pred_fallthru
        _
      %p155 = scmp.le.s32.totalorder 1, %s15
      %p156 = scmp.lt.s32.totalorder %s15, 3
      %p157 = pnand %p155, %p156
      %p158 = pneg %p157
      // Predicated region
      $region25: #{tpu_custom_call.1} parent=5 // pred_check
        _
      $region26: #{tpu_custom_call.1} parent=5 // pred_check_branch
        %160 = sbr.rel (%p157) target = $region28
      $region27: #{tpu_custom_call.1} parent=5 // pred_region
        %s161 = ssub.s32 %s15, 1
        // Predicated region
        $region29: #{tpu_custom_call.1} parent=27 // pred_check
          %p162 = pneg %p48
        $region30: #{tpu_custom_call.1} parent=27 // pred_check_branch
          %164 = sbr.rel (%p162) target = $region32
        $region31: #{tpu_custom_call.1} parent=27 // pred_region
          %166 = dma.done [#allocation5], 16
        $region32: #{tpu_custom_call.1} parent=27 // pred_fallthru
          _
        %s167 = sand.u32 %s63, 1
        %s168 = scalar_lea.sflag [#allocation3], %s167
        %s169 = sand.u32 %s63, 1
        %s170 = smul.addr %s169, 8
        %s171 = scalar_lea.vmem [#allocation6], %s170
        // Predicated region
        $region33: #{tpu_custom_call.1} parent=27 // pred_check
          %p172 = pneg %p76
        $region34: #{tpu_custom_call.1} parent=27 // pred_check_branch
          %174 = sbr.rel (%p172) target = $region36
        $region35: #{tpu_custom_call.1} parent=27 // pred_region
          %176 = dma.done %s168, 128
        $region36: #{tpu_custom_call.1} parent=27 // pred_fallthru
          _
        %177 = sfence
        %p178 = pneg %p48
        %p179 = pneg %p45
        %s180 = sand.u32 %s63, 1
        %s181 = scalar_lea.sflag [#allocation3], %s180
        %s182 = sand.u32 %s63, 1
        %s183 = smul.addr %s182, 8
        %s184 = scalar_lea.vmem [#allocation6], %s183
        %p185 = pneg %p76
        %p186 = pneg %p73
        %p187 = pneg %p104
        %p188 = pneg %p101
        %s189 = sand.u32 %s91, 1
        %s190 = scalar_lea.sflag [#allocation4], %s189
        %s191 = sand.u32 %s91, 1
        %s192 = smul.addr %s191, 8
        %s193 = scalar_lea.vmem [#allocation7], %s192
        %v194 = vld [vmem:[%s171] sm:$0xff]
        %196 = vst [vmem:[#allocation1] ss:$2 sm:$0xff] %v194
        %v197 = vld.sshfl [vmem:[#allocation1] sm:$0xff pattern:$0x75316420]
        %v198 = vld.sshfl [vmem:[#allocation1 + $0x8] sm:$0xff pattern:$0x75316420]
        %vm201 = vcmask 1043456
        %v202 = vsel %vm201, %v197, 0.0
        %v203 = vsel %vm201, %v198, 0.0
        %v204 = vadd.f32 %v202, %v203
        %205 = vadd.xlane.f32.xlu0 %v204
        %v206 = vpop.xlane.xlu0 %205
        %v207 = vmul.f32 %v206, 0.00390625
        %v209 = vrot.slane %v207, 7
        %vm211 = vcmask 1040384
        %v212 = vsel %vm211, 0.0, %v209
        %vm213 = vcmask 1044480
        %v214 = vsel %vm213, %v212, 0.0
        %s215 = sld [smem:[#allocation2]]
        %v216 = vstv %s215
        %v217 = vmul.f32 %v216, %v214
        %s218 = sld [smem:[#allocation2 + $0x1]]
        %v219 = vstv %s218
        %v220 = vmul.f32 %v219, %v214
        %v222 = vrot.slane %v220, 1
        %v224 = vadd.f32 %v217, %v222
        %s225 = sld [smem:[#allocation2 + $0x2]]
        %v226 = vstv %s225
        %v227 = vmul.f32 %v226, %v214
        %v229 = vrot.slane %v227, 2
        %v231 = vadd.f32 %v224, %v229
        %v232 = vxor.u32 %v231, 2147483648
        %v233 = vmul.f32 %v232, 1.442695
        %v234 = vpow.pop %v233
        %v235 = vadd.f32 %v234, 1.0
        %v236 = vrcp.pop %v235
        %v237 = vmul.f32 %v235, %v236
        %v238 = vsub.f32 1.0, %v237
        %v239 = vmul.f32 %v236, %v238
        %v240 = vadd.f32 %v236, %v239
        %vm241 = vweird.f32 %v235
        %vm242 = vweird.f32 %v236
        %vm243 = vmor %vm241, %vm242
        %v244 = vsel %vm243, %v236, %v240
        %v245 = vand.u32 2147483647, %v235
        %vm246 = vcmp.eq.f32.partialorder %v245, 8.507059e+37
        %v247 = vand.u32 %v235, 2147483648
        %v248 = vor.u32 1.1754944e-38, %v247
        %v249 = vsel %vm246, %v248, %v244
        %v250 = vmul.f32 1.0, %v249
        %252 = vset.pattern.permute.xlu0 0
        %253 = vperm.xlu0 %252, %v250
        %v254 = vpop.permute.xlu0 %253
        %v256 = vunpack.c.l.s4 839922192
        %v257 = vunpack.c.0.s8 %v256
        %v258 = vperm.slane %v254, %v257
        %v260 = vmul.f32 %v194, %v258
        %261 = vst [vmem:[%s193] sm:$0xff] %v260
        %s262 = sand.u32 %s91, 1
        %s263 = scalar_lea.sflag [#allocation4], %s262
        %s264 = sand.u32 %s91, 1
        %s265 = smul.addr %s264, 8
        %s266 = scalar_lea.vmem [#allocation7], %s265
        // Predicated region
        $region37: #{tpu_custom_call.1} parent=27 // pred_check
          %p267 = pneg %p101
        $region38: #{tpu_custom_call.1} parent=27 // pred_check_branch
          %269 = sbr.rel (%p267) target = $region40
        $region39: #{tpu_custom_call.1} parent=27 // pred_region
          %271 = vsyncadd %s263, 0
          %s272 = smul.addr %s25, 2
          %s273 = smul.addr %s24, 2
          %s274 = sadd.s32 %s272, %s273
          %s275 = smul.addr %s274, 4
          %s276 = scalar_lea.hbm %s2, %s275
          %s278 = sshll.u32 %s266, 4
          %s279 = int_to_ptr.vmem [resolvable:$true] %s278
          %s280 = sshll.u32 %s276, 4
          %s281 = int_to_ptr.hbm [resolvable:$true] %s280
          %283 = dma.vmem_to_hbm [thread:$0]  %s279, 128, %s281, %s263
        $region40: #{tpu_custom_call.1} parent=27 // pred_fallthru
          _
      $region28: #{tpu_custom_call.1} parent=5 // pred_fallthru
        _
      %p284 = scmp.le.s32.totalorder 2, %s15
      // Predicated region
      $region41: #{tpu_custom_call.1} parent=5 // pred_check
        %p285 = pneg %p284
      $region42: #{tpu_custom_call.1} parent=5 // pred_check_branch
        %287 = sbr.rel (%p285) target = $region44
      $region43: #{tpu_custom_call.1} parent=5 // pred_region
        %s288 = ssub.s32 %s15, 2
        // Predicated region
        $region45: #{tpu_custom_call.1} parent=43 // pred_check
          %p289 = pneg %p107
        $region46: #{tpu_custom_call.1} parent=43 // pred_check_branch
          %291 = sbr.rel (%p289) target = $region48
        $region47: #{tpu_custom_call.1} parent=43 // pred_region
          %s292 = sand.u32 %s92, 1
          %s293 = scalar_lea.sflag [#allocation4], %s292
          %s294 = sand.u32 %s92, 1
          %s295 = smul.addr %s294, 8
          %s296 = scalar_lea.vmem [#allocation7], %s295
          %298 = dma.done %s293, 128
        $region48: #{tpu_custom_call.1} parent=43 // pred_fallthru
          _
      $region44: #{tpu_custom_call.1} parent=5 // pred_fallthru
        _
    $region6: #{tpu_custom_call.1} parent=1 // loop_footer
      %s19 = sadd.s32 1, %s15
    $region7: #{tpu_custom_call.1} parent=1 // loop_footer_branch
      %14 = sbr.rel target = $region3
    $region8: #{tpu_custom_call.1} parent=1 // loop_exit
      _
    %299 = vsyncpa [#allocation3], 1
    %s300 = scalar_lea.sflag [#allocation3], 1
    %301 = vsyncpa %s300, 1
    %302 = vsyncpa [#allocation4], 1
    %s303 = scalar_lea.sflag [#allocation4], 1
    %304 = vsyncpa %s303, 1
    %305 = vsyncpa [#allocation5], 1
    %s306 = scalar_lea.sflag [#allocation5], 1
    %307 = vsyncpa %s306, 1

</llo_original>
